<compile_context>
chip_gen: v7x
topology: tpu7x:2x2x1
jax: 0.10.0
libtpu: 0.0.40
codegen_flags: <defaults>
</compile_context>

<pallas_src>
import functools

import jax
import jax.numpy as jnp
from jax import lax
from jax.experimental import pallas as pl
from jax.experimental.pallas import tpu as pltpu


def _round_up(x, m):
    return ((x + m - 1) // m) * m


# ---------------------------------------------------------------------------
# Stage 1: z = x @ W + (iden + b)   (bias pre-folded into iden in the wrapper).
# ---------------------------------------------------------------------------
def _z_kernel(x_ref, w_ref, ib_ref, z_ref):
    z_ref[...] = (
        jnp.dot(x_ref[...], w_ref[...], preferred_element_type=jnp.float32)
        + ib_ref[...]
    ).astype(z_ref.dtype)


# ---------------------------------------------------------------------------
# Stage 2: A_pred tile (TM, TN) = sigmoid(z_rows @ z_cols.T).
# ---------------------------------------------------------------------------
def _a_pred_kernel(zr_ref, zc_ref, a_ref, *, fast):
    # NT-form matmul: contract axis 1 of both operands directly on the MXU —
    # no explicit transpose of the column tile.
    # TODO(synk): confirm via a bundle dump that Mosaic lowers this without an
    # XLU vxpose relayout of the (TN, Hp) operand; if it inserts one, hoist a
    # single transpose of z outside the grid instead of paying it per tile.
    logits = lax.dot_general(
        zr_ref[...], zc_ref[...],
        dimension_numbers=(((1,), (1,)), ((), ())),
        preferred_element_type=jnp.float32,
    )
    if fast:
        # sigmoid(x) = 0.5*tanh(0.5*x) + 0.5: one EUP push per element (vs
        # exp + reciprocal = two) plus cheap VPU FMAs.
        a = 0.5 * jnp.tanh(0.5 * logits) + 0.5
    else:
        a = jax.nn.sigmoid(logits)
    a_ref[...] = a.astype(a_ref.dtype)


def pseudo_gat_forward(x, w, b, iden, *, tm=128, tn=128, tmz=128,
                       fast=False, a_dtype=jnp.float32):
    N, F = x.shape
    H = w.shape[1]
    assert b.shape == (1, H)
    assert iden.shape == (N, H)

    # Lane-dense zero padding (multiples of 128); padding does not change
    # x @ W, the iden/bias add, or z @ z.T on the kept rows/columns.
    hp = _round_up(H, 128)
    fp = _round_up(F, 128)
    np_ = _round_up(N, 128)

    tm = min(tm, np_)
    tn = min(tn, np_)
    tmz = min(tmz, np_)
    assert np_ % tm == 0 and np_ % tn == 0 and np_ % tmz == 0

    x_p = jnp.pad(x, ((0, np_ - N), (0, fp - F)))
    w_p = jnp.pad(w, ((0, fp - F), (0, hp - H)))
    # Fold the bias into iden: one fewer input DMA + one fewer VPU add/elem.
    iden_b = jnp.pad(iden + b, ((0, np_ - N), (0, hp - H)))

    # --- Stage 1: z (computed once over all rows) ---------------------------
    z_pad = pl.pallas_call(
        _z_kernel,
        out_shape=jax.ShapeDtypeStruct((np_, hp), jnp.float32),
        grid=(np_ // tmz,),
        in_specs=[
            pl.BlockSpec((tmz, fp), lambda i: (i, 0)),      # x row tile
            # W is grid-invariant: single-buffer it (default double-buffering
            # wastes VMEM on a block that is only fetched once).
            pl.BlockSpec((fp, hp), lambda i: (0, 0),
                         pipeline_mode=pl.Buffered(1)),
            pl.BlockSpec((tmz, hp), lambda i: (i, 0)),      # iden+b row tile
        ],
        out_specs=pl.BlockSpec((tmz, hp), lambda i: (i, 0)),
        compiler_params=pltpu.CompilerParams(
            dimension_semantics=("parallel",)),
    )(x_p, w_p, iden_b)

    # Fast path: cast once here so the stage-2 input DMA traffic is halved.
    # Accuracy is data-dependent (logit error scales with |z . z|); keep
    # fast=False for the exact f32 semantics of the PyTorch module.
    z_mm = z_pad.astype(jnp.bfloat16) if fast else z_pad

    # --- Stage 2: A_pred = sigmoid(z @ z.T), 2-D tiled ----------------------
    a_pred = pl.pallas_call(
        functools.partial(_a_pred_kernel, fast=fast),
        out_shape=jax.ShapeDtypeStruct((np_, np_), a_dtype),
        grid=(np_ // tm, np_ // tn),
        in_specs=[
            pl.BlockSpec((tm, hp), lambda i, j: (i, 0)),    # z row tile
            pl.BlockSpec((tn, hp), lambda i, j: (j, 0)),    # z col tile
        ],
        out_specs=pl.BlockSpec((tm, tn), lambda i, j: (i, j)),
        compiler_params=pltpu.CompilerParams(
            dimension_semantics=("parallel", "parallel")),
    )(z_mm, z_mm)

    return a_pred[:N, :N], z_pad[:N, :H]


def reference_forward(x, w, b, iden):
    z = x @ w + b + iden
    return jax.nn.sigmoid(z @ z.T), z


if __name__ == "__main__":
    # Shapes consistent with the module:
    #   num_points (N) = 128, num_features (F) = 64, hidden_size (H) = 32
    N, F, H = 128, 64, 32

    key = jax.random.PRNGKey(0)
    k_x, k_w, k_b, k_iden = jax.random.split(key, 4)

    x = jax.random.normal(k_x, (N, F), dtype=jnp.float32)
    # Deterministic "parameters" (nn.Linear weight/bias + iden Parameter).
    w = jax.random.normal(k_w, (F, H), dtype=jnp.float32) * (1.0 / jnp.sqrt(F))
    b = jax.random.normal(k_b, (1, H), dtype=jnp.float32) * 0.01
    iden = jax.random.normal(k_iden, (N, H), dtype=jnp.float32)

    a_ref, z_ref = reference_forward(x, w, b, iden)

    # Exact (f32) path — matches the PyTorch module semantics.
    a_pred, z = pseudo_gat_forward(x, w, b, iden, fast=False)
    jax.block_until_ready((a_pred, z))
    assert a_pred.shape == (N, N) and z.shape == (N, H)
    assert jnp.allclose(z, z_ref, atol=1e-4, rtol=1e-4)
    assert jnp.allclose(a_pred, a_ref, atol=1e-4, rtol=1e-4)

    # Fast path (bf16 z@z.T operands + tanh-form sigmoid).  Sigmoid outputs
    # live in [0, 1], so a loose absolute tolerance is the right check.
    a_fast, z_fast = pseudo_gat_forward(x, w, b, iden, fast=True)
    jax.block_until_ready((a_fast, z_fast))
    assert jnp.allclose(z_fast, z_ref, atol=1e-4, rtol=1e-4)
    assert jnp.allclose(a_fast, a_ref, atol=5e-2, rtol=5e-2)

    print("KERNEL_OK")
</pallas_src>

<mosaic_0001>
module attributes {stable_mosaic.version = 11 : i64} {
  func.func @_z_kernel(%arg0: i32, %arg1: memref<128x128xf32, #tpu.memory_space<vmem>>, %arg2: memref<128x128xf32, #tpu.memory_space<vmem>>, %arg3: memref<128x128xf32, #tpu.memory_space<vmem>>, %arg4: memref<128x128xf32, #tpu.memory_space<vmem>>) attributes {dimension_semantics = [#tpu.dimension_semantics<parallel>], iteration_bounds = array<i64: 1>, scalar_prefetch = 0 : i64, scratch_operands = 0 : i64, tpu.core_type = #tpu.core_type<tc>, window_params = [{transform_indices = @transform_0, window_bounds = array<i64: 128, 128>}, {pipeline_mode = #tpu.pipeline_mode<synchronous>, transform_indices = @transform_1, window_bounds = array<i64: 128, 128>}, {transform_indices = @transform_2, window_bounds = array<i64: 128, 128>}, {transform_indices = @transform_3, window_bounds = array<i64: 128, 128>}]} {
    %c0 = arith.constant 0 : index
    %c0_0 = arith.constant 0 : index
    %0 = vector.load %arg1[%c0, %c0_0] : memref<128x128xf32, #tpu.memory_space<vmem>>, vector<128x128xf32>
    %c0_1 = arith.constant 0 : index
    %c0_2 = arith.constant 0 : index
    %1 = vector.load %arg2[%c0_1, %c0_2] : memref<128x128xf32, #tpu.memory_space<vmem>>, vector<128x128xf32>
    %cst = arith.constant dense<0.000000e+00> : vector<128x128xf32>
    %2 = tpu.matmul %0, %1, %cst {dimension_numbers = #tpu.dot_dimension_numbers<[1], [0], [0], [1], [0, 0, 1, 1], [], []>} : vector<128x128xf32>, vector<128x128xf32>, vector<128x128xf32> -> vector<128x128xf32>
    %c0_3 = arith.constant 0 : index
    %c0_4 = arith.constant 0 : index
    %3 = vector.load %arg3[%c0_3, %c0_4] : memref<128x128xf32, #tpu.memory_space<vmem>>, vector<128x128xf32>
    %4 = arith.addf %2, %3 : vector<128x128xf32>
    %c0_5 = arith.constant 0 : index
    %c0_6 = arith.constant 0 : index
    %5 = vector.load %arg4[%c0_5, %c0_6] : memref<128x128xf32, #tpu.memory_space<vmem>>, vector<128x128xf32>
    tpu.vector_store %arg4[%c0_5, %c0_6], %4 {strides = array<i32>} : memref<128x128xf32, #tpu.memory_space<vmem>>, vector<128x128xf32>,
    return
  }
  func.func @transform_0(%arg0: i32) -> (i32, i32) {
    %c0_i32 = arith.constant 0 : i32
    %c0_i32_0 = arith.constant 0 : i32
    return %arg0, %c0_i32 : i32, i32
  }
  func.func @transform_1(%arg0: i32) -> (i32, i32) {
    %c0_i32 = arith.constant 0 : i32
    %c0_i32_0 = arith.constant 0 : i32
    %c0_i32_1 = arith.constant 0 : i32
    return %c0_i32, %c0_i32_0 : i32, i32
  }
  func.func @transform_2(%arg0: i32) -> (i32, i32) {
    %c0_i32 = arith.constant 0 : i32
    %c0_i32_0 = arith.constant 0 : i32
    return %arg0, %c0_i32 : i32, i32
  }
  func.func @transform_3(%arg0: i32) -> (i32, i32) {
    %c0_i32 = arith.constant 0 : i32
    %c0_i32_0 = arith.constant 0 : i32
    return %arg0, %c0_i32 : i32, i32
  }
}

</mosaic_0001>

<llo_original>
// kernel: tpu_custom_call.1
$region0: #{tpu_custom_call.1}
  #allocation0 [shape = 'u32[]', space=smem, size = 0x4, offset = 0x4, fixed_abs, tag = 'smem constant byte address 0x4 - core index']
  #allocation1 [shape = 'u32[144,128]{1,0:T(1,128)}', space=vmem, size = 0x12000, scoped, tag = 'internal scratch']
  %s0 = inlined_call_operand.hbm [shape: f32[128,128], index: 0, kind: input, shape index: {}]
  %s1 = inlined_call_operand.hbm [shape: f32[128,128], index: 1, kind: input, shape index: {}]
  %s2 = inlined_call_operand.hbm [shape: f32[128,128], index: 2, kind: input, shape index: {}]
  %s3 = inlined_call_operand.hbm [shape: f32[128,128], index: 3, kind: output, shape index: {}]
  %s4 = sld [smem:[#allocation0]]
  $region34: #{tpu_custom_call.1} parent=0
    _
  %s6 = ssub.s32 1, %s4
  %s7 = scalar_select 0, %s6, %s4
  $region1: #{tpu_custom_call.1} parent=0
    #allocation2 [shape = 'u8[65536]{0}', space=vmem, size = 0x10000, scoped, tag = 'input window, operand 0, single buffered']
    #allocation3 [shape = 's32[1]{0}', space=sflag, size = 0x4, scoped, tag = 'scoped memory for tpu_custom_call.1']
    #allocation4 [shape = 's32[1]{0}', space=sflag, size = 0x4, scoped, tag = 'scoped memory for tpu_custom_call.1']
    #allocation5 [shape = 'u8[65536]{0}', space=vmem, size = 0x10000, scoped, tag = 'input window, operand 1, single buffered']
    #allocation6 [shape = 's32[1]{0}', space=sflag, size = 0x4, scoped, tag = 'scoped memory for tpu_custom_call.1']
    #allocation7 [shape = 'u8[65536]{0}', space=vmem, size = 0x10000, scoped, tag = 'input window, operand 2, single buffered']
    #allocation8 [shape = 'u8[65536]{0}', space=vmem, size = 0x10000, scoped, tag = 'output window, operand 0, single buffered']
    %8 = vsyncpa [#allocation3], 0
    %9 = vsyncpa [#allocation6], 0
    %10 = vsyncpa [#allocation4], 0
    // Predicated region
    $region2: #{tpu_custom_call.1} parent=1 // pred_check
      _
    $region3: #{tpu_custom_call.1} parent=1 // pred_check_branch
      %12 = sbr.rel (0) target = $region5
    $region4: #{tpu_custom_call.1} parent=1 // pred_region
      %s14 = ssub.s32 2048, 2048
      %15 = vsyncadd [#allocation3], %s14
      %s16 = sshll.u32 [#allocation2], 4
      %s17 = int_to_ptr.vmem [resolvable:$true] %s16
      %22 = dma.hbm_to_vmem [thread:$0]  %s0, 2048, %s17, [#allocation3], 128, 128, 8
    $region5: #{tpu_custom_call.1} parent=1 // pred_fallthru
      _
    // Predicated region
    $region6: #{tpu_custom_call.1} parent=1 // pred_check
      _
    $region7: #{tpu_custom_call.1} parent=1 // pred_check_branch
      %24 = sbr.rel (0) target = $region9
    $region8: #{tpu_custom_call.1} parent=1 // pred_region
      %s26 = ssub.s32 2048, 2048
      %27 = vsyncadd [#allocation6], %s26
      %s28 = sshll.u32 [#allocation5], 4
      %s29 = int_to_ptr.vmem [resolvable:$true] %s28
      %34 = dma.hbm_to_vmem [thread:$0]  %s1, 2048, %s29, [#allocation6], 128, 128, 8
    $region9: #{tpu_custom_call.1} parent=1 // pred_fallthru
      _
    // Predicated region
    $region10: #{tpu_custom_call.1} parent=1 // pred_check
      _
    $region11: #{tpu_custom_call.1} parent=1 // pred_check_branch
      %36 = sbr.rel (0) target = $region13
    $region12: #{tpu_custom_call.1} parent=1 // pred_region
      %s38 = ssub.s32 2048, 2048
      %39 = vsyncadd [#allocation6], %s38
      %s40 = sshll.u32 [#allocation7], 4
      %s41 = int_to_ptr.vmem [resolvable:$true] %s40
      %46 = dma.hbm_to_vmem [thread:$0]  %s2, 2048, %s41, [#allocation6], 128, 128, 8
    $region13: #{tpu_custom_call.1} parent=1 // pred_fallthru
      _
    // Predicated region
    $region14: #{tpu_custom_call.1} parent=1 // pred_check
      _
    $region15: #{tpu_custom_call.1} parent=1 // pred_check_branch
      %48 = sbr.rel (0) target = $region17
    $region16: #{tpu_custom_call.1} parent=1 // pred_region
      %49 = dma.done [#allocation3], 2048
    $region17: #{tpu_custom_call.1} parent=1 // pred_fallthru
      _
    // Predicated region
    $region18: #{tpu_custom_call.1} parent=1 // pred_check
      _
    $region19: #{tpu_custom_call.1} parent=1 // pred_check_branch
      %51 = sbr.rel (0) target = $region21
    $region20: #{tpu_custom_call.1} parent=1 // pred_region
      %52 = dma.done [#allocation6], 2048
    $region21: #{tpu_custom_call.1} parent=1 // pred_fallthru
      _
    // Predicated region
    $region22: #{tpu_custom_call.1} parent=1 // pred_check
      _
    $region23: #{tpu_custom_call.1} parent=1 // pred_check_branch
      %54 = sbr.rel (0) target = $region25
    $region24: #{tpu_custom_call.1} parent=1 // pred_region
      %55 = dma.done [#allocation6], 2048
    $region25: #{tpu_custom_call.1} parent=1 // pred_fallthru
      _
    %v56 = vld [vmem:[#allocation2] sm:$0xff]
    %v57 = vld [vmem:[#allocation2 + $0x8] sm:$0xff]
    %v58 = vld [vmem:[#allocation2 + $0x10] sm:$0xff]
    %v59 = vld [vmem:[#allocation2 + $0x18] sm:$0xff]
    %v60 = vld [vmem:[#allocation2 + $0x20] sm:$0xff]
    %v61 = vld [vmem:[#allocation2 + $0x28] sm:$0xff]
    %v62 = vld [vmem:[#allocation2 + $0x30] sm:$0xff]
    %v63 = vld [vmem:[#allocation2 + $0x38] sm:$0xff]
    %v64 = vld [vmem:[#allocation2 + $0x40] sm:$0xff]
    %v65 = vld [vmem:[#allocation2 + $0x48] sm:$0xff]
    %v66 = vld [vmem:[#allocation2 + $0x50] sm:$0xff]
    %v67 = vld [vmem:[#allocation2 + $0x58] sm:$0xff]
    %v68 = vld [vmem:[#allocation2 + $0x60] sm:$0xff]
    %v69 = vld [vmem:[#allocation2 + $0x68] sm:$0xff]
    %v70 = vld [vmem:[#allocation2 + $0x70] sm:$0xff]
    %v71 = vld [vmem:[#allocation2 + $0x78] sm:$0xff]
    %v72 = vld [vmem:[#allocation5] sm:$0xff]
    %v73 = vld [vmem:[#allocation5 + $0x8] sm:$0xff]
    %v74 = vld [vmem:[#allocation5 + $0x10] sm:$0xff]
    %v75 = vld [vmem:[#allocation5 + $0x18] sm:$0xff]
    %v76 = vld [vmem:[#allocation5 + $0x20] sm:$0xff]
    %v77 = vld [vmem:[#allocation5 + $0x28] sm:$0xff]
    %v78 = vld [vmem:[#allocation5 + $0x30] sm:$0xff]
    %v79 = vld [vmem:[#allocation5 + $0x38] sm:$0xff]
    %v80 = vld [vmem:[#allocation5 + $0x40] sm:$0xff]
    %v81 = vld [vmem:[#allocation5 + $0x48] sm:$0xff]
    %v82 = vld [vmem:[#allocation5 + $0x50] sm:$0xff]
    %v83 = vld [vmem:[#allocation5 + $0x58] sm:$0xff]
    %v84 = vld [vmem:[#allocation5 + $0x60] sm:$0xff]
    %v85 = vld [vmem:[#allocation5 + $0x68] sm:$0xff]
    %v86 = vld [vmem:[#allocation5 + $0x70] sm:$0xff]
    %v87 = vld [vmem:[#allocation5 + $0x78] sm:$0xff]
    %v88 = vld [vmem:[#allocation7] sm:$0xff]
    %v89 = vld [vmem:[#allocation7 + $0x8] sm:$0xff]
    %v90 = vld [vmem:[#allocation7 + $0x10] sm:$0xff]
    %v91 = vld [vmem:[#allocation7 + $0x18] sm:$0xff]
    %v92 = vld [vmem:[#allocation7 + $0x20] sm:$0xff]
    %v93 = vld [vmem:[#allocation7 + $0x28] sm:$0xff]
    %v94 = vld [vmem:[#allocation7 + $0x30] sm:$0xff]
    %v95 = vld [vmem:[#allocation7 + $0x38] sm:$0xff]
    %v96 = vld [vmem:[#allocation7 + $0x40] sm:$0xff]
    %v97 = vld [vmem:[#allocation7 + $0x48] sm:$0xff]
    %v98 = vld [vmem:[#allocation7 + $0x50] sm:$0xff]
    %v99 = vld [vmem:[#allocation7 + $0x58] sm:$0xff]
    %v100 = vld [vmem:[#allocation7 + $0x60] sm:$0xff]
    %v101 = vld [vmem:[#allocation7 + $0x68] sm:$0xff]
    %v102 = vld [vmem:[#allocation7 + $0x70] sm:$0xff]
    %v103 = vld [vmem:[#allocation7 + $0x78] sm:$0xff]
    %104 = vmatprep.subr.mxu0 0.0
    %105 = vmatpush1.msra.mxu0 %v72
    %106 = vmatprep.subr.mxu0 0.0
    %107 = vmatpush1.msra.mxu0 %v73
    %108 = vmatprep.subr.mxu0 0.0
    %109 = vmatpush1.msra.mxu0 %v74
    %110 = vmatprep.subr.mxu0 0.0
    %111 = vmatpush1.msra.mxu0 %v75
    %112 = vmatprep.subr.mxu0 0.0
    %113 = vmatpush1.msra.mxu0 %v76
    %114 = vmatprep.subr.mxu0 0.0
    %115 = vmatpush1.msra.mxu0 %v77
    %116 = vmatprep.subr.mxu0 0.0
    %117 = vmatpush1.msra.mxu0 %v78
    %118 = vmatprep.subr.mxu0 0.0
    %119 = vmatpush1.msra.mxu0 %v79
    %120 = vmatprep.subr.mxu0 0.0
    %121 = vmatpush1.msra.mxu0 %v80
    %122 = vmatprep.subr.mxu0 0.0
    %123 = vmatpush1.msra.mxu0 %v81
    %124 = vmatprep.subr.mxu0 0.0
    %125 = vmatpush1.msra.mxu0 %v82
    %126 = vmatprep.subr.mxu0 0.0
    %127 = vmatpush1.msra.mxu0 %v83
    %128 = vmatprep.subr.mxu0 0.0
    %129 = vmatpush1.msra.mxu0 %v84
    %130 = vmatprep.subr.mxu0 0.0
    %131 = vmatpush1.msra.mxu0 %v85
    %132 = vmatprep.subr.mxu0 0.0
    %133 = vmatpush1.msra.mxu0 %v86
    %134 = vmatprep.subr.mxu0 0.0
    %135 = vmatpush1.msra.mxu0 %v87
    %136 = vmatprep.subr.mxu0 0.0
    %137 = vmatpush1.msra.mxu0 0.0
    %138 = vmatprep.subr.mxu0 0.0
    %139 = vmatpush1.msra.mxu0 0.0
    %140 = vmatprep.subr.mxu0 0.0
    %141 = vmatpush1.msra.mxu0 0.0
    %142 = vmatprep.subr.mxu0 0.0
    %143 = vmatpush1.msra.mxu0 0.0
    %144 = vmatprep.subr.mxu0 0.0
    %145 = vmatpush1.msra.mxu0 0.0
    %146 = vmatprep.subr.mxu0 0.0
    %147 = vmatpush1.msra.mxu0 0.0
    %148 = vmatprep.subr.mxu0 0.0
    %149 = vmatpush1.msra.mxu0 0.0
    %150 = vmatprep.subr.mxu0 0.0
    %151 = vmatpush1.msra.mxu0 0.0
    %152 = vmatprep.subr.mxu0 0.0
    %153 = vmatpush1.msra.mxu0 0.0
    %154 = vmatprep.subr.mxu0 0.0
    %155 = vmatpush1.msra.mxu0 0.0
    %156 = vmatprep.subr.mxu0 0.0
    %157 = vmatpush1.msra.mxu0 0.0
    %158 = vmatprep.subr.mxu0 0.0
    %159 = vmatpush1.msra.mxu0 0.0
    %160 = vmatprep.subr.mxu0 0.0
    %161 = vmatpush1.msra.mxu0 0.0
    %162 = vmatprep.subr.mxu0 0.0
    %163 = vmatpush1.msra.mxu0 0.0
    %164 = vmatprep.subr.mxu0 0.0
    %165 = vmatpush1.msra.mxu0 0.0
    %166 = vmatprep.subr.mxu0 0.0
    %167 = vmatpush1.msra.mxu0 0.0
    %168 = vmatprep.mubr.f32.mxu0 0.0
    %169 = vmatmul.mubr.f32.gmra.mrb[0].mxu0 %v56
    %v170 = vpop.f32.mrb[0].mxu0
    %v171 = vadd.f32 %v88, %v170
    %v172 = vpop.f32.mrb[0].mxu0
    %173 = vmatprep.mubr.f32.mxu0 0.0
    %174 = vmatmul.mubr.f32.gmra.mrb[0].mxu0 %v57
    %v175 = vpop.f32.mrb[0].mxu0
    %v176 = vadd.f32 %v89, %v175
    %v177 = vpop.f32.mrb[0].mxu0
    %178 = vmatprep.mubr.f32.mxu0 0.0
    %179 = vmatmul.mubr.f32.gmra.mrb[0].mxu0 %v58
    %v180 = vpop.f32.mrb[0].mxu0
    %v181 = vadd.f32 %v90, %v180
    %v182 = vpop.f32.mrb[0].mxu0
    %183 = vmatprep.mubr.f32.mxu0 0.0
    %184 = vmatmul.mubr.f32.gmra.mrb[0].mxu0 %v59
    %v185 = vpop.f32.mrb[0].mxu0
    %v186 = vadd.f32 %v91, %v185
    %v187 = vpop.f32.mrb[0].mxu0
    %188 = vmatprep.mubr.f32.mxu0 0.0
    %189 = vmatmul.mubr.f32.gmra.mrb[0].mxu0 %v60
    %v190 = vpop.f32.mrb[0].mxu0
    %v191 = vadd.f32 %v92, %v190
    %v192 = vpop.f32.mrb[0].mxu0
    %193 = vmatprep.mubr.f32.mxu0 0.0
    %194 = vmatmul.mubr.f32.gmra.mrb[0].mxu0 %v61
    %v195 = vpop.f32.mrb[0].mxu0
    %v196 = vadd.f32 %v93, %v195
    %v197 = vpop.f32.mrb[0].mxu0
    %198 = vmatprep.mubr.f32.mxu0 0.0
    %199 = vmatmul.mubr.f32.gmra.mrb[0].mxu0 %v62
    %v200 = vpop.f32.mrb[0].mxu0
    %v201 = vadd.f32 %v94, %v200
    %v202 = vpop.f32.mrb[0].mxu0
    %203 = vmatprep.mubr.f32.mxu0 0.0
    %204 = vmatmul.mubr.f32.gmra.mrb[0].mxu0 %v63
    %v205 = vpop.f32.mrb[0].mxu0
    %v206 = vadd.f32 %v95, %v205
    %v207 = vpop.f32.mrb[0].mxu0
    %208 = vmatprep.mubr.f32.mxu0 0.0
    %209 = vmatmul.mubr.f32.gmra.mrb[0].mxu0 %v64
    %v210 = vpop.f32.mrb[0].mxu0
    %v211 = vadd.f32 %v96, %v210
    %v212 = vpop.f32.mrb[0].mxu0
    %213 = vmatprep.mubr.f32.mxu0 0.0
    %214 = vmatmul.mubr.f32.gmra.mrb[0].mxu0 %v65
    %v215 = vpop.f32.mrb[0].mxu0
    %v216 = vadd.f32 %v97, %v215
    %v217 = vpop.f32.mrb[0].mxu0
    %218 = vmatprep.mubr.f32.mxu0 0.0
    %219 = vmatmul.mubr.f32.gmra.mrb[0].mxu0 %v66
    %v220 = vpop.f32.mrb[0].mxu0
    %v221 = vadd.f32 %v98, %v220
    %v222 = vpop.f32.mrb[0].mxu0
    %223 = vmatprep.mubr.f32.mxu0 0.0
    %224 = vmatmul.mubr.f32.gmra.mrb[0].mxu0 %v67
    %v225 = vpop.f32.mrb[0].mxu0
    %v226 = vadd.f32 %v99, %v225
    %v227 = vpop.f32.mrb[0].mxu0
    %228 = vmatprep.mubr.f32.mxu0 0.0
    %229 = vmatmul.mubr.f32.gmra.mrb[0].mxu0 %v68
    %v230 = vpop.f32.mrb[0].mxu0
    %v231 = vadd.f32 %v100, %v230
    %v232 = vpop.f32.mrb[0].mxu0
    %233 = vmatprep.mubr.f32.mxu0 0.0
    %234 = vmatmul.mubr.f32.gmra.mrb[0].mxu0 %v69
    %v235 = vpop.f32.mrb[0].mxu0
    %v236 = vadd.f32 %v101, %v235
    %v237 = vpop.f32.mrb[0].mxu0
    %238 = vmatprep.mubr.f32.mxu0 0.0
    %239 = vmatmul.mubr.f32.gmra.mrb[0].mxu0 %v70
    %v240 = vpop.f32.mrb[0].mxu0
    %v241 = vadd.f32 %v102, %v240
    %v242 = vpop.f32.mrb[0].mxu0
    %243 = vmatprep.mubr.f32.mxu0 0.0
    %244 = vmatmul.mubr.f32.gmra.mrb[0].mxu0 %v71
    %v245 = vpop.f32.mrb[0].mxu0
    %v246 = vadd.f32 %v103, %v245
    %v247 = vpop.f32.mrb[0].mxu0
    %248 = vdwg.mxu0
    %249 = vst [vmem:[#allocation8] sm:$0xff] %v171
    %250 = vst [vmem:[#allocation8 + $0x8] sm:$0xff] %v176
    %251 = vst [vmem:[#allocation8 + $0x10] sm:$0xff] %v181
    %252 = vst [vmem:[#allocation8 + $0x18] sm:$0xff] %v186
    %253 = vst [vmem:[#allocation8 + $0x20] sm:$0xff] %v191
    %254 = vst [vmem:[#allocation8 + $0x28] sm:$0xff] %v196
    %255 = vst [vmem:[#allocation8 + $0x30] sm:$0xff] %v201
    %256 = vst [vmem:[#allocation8 + $0x38] sm:$0xff] %v206
    %257 = vst [vmem:[#allocation8 + $0x40] sm:$0xff] %v211
    %258 = vst [vmem:[#allocation8 + $0x48] sm:$0xff] %v216
    %259 = vst [vmem:[#allocation8 + $0x50] sm:$0xff] %v221
    %260 = vst [vmem:[#allocation8 + $0x58] sm:$0xff] %v226
    %261 = vst [vmem:[#allocation8 + $0x60] sm:$0xff] %v231
    %262 = vst [vmem:[#allocation8 + $0x68] sm:$0xff] %v236
    %263 = vst [vmem:[#allocation8 + $0x70] sm:$0xff] %v241
    %264 = vst [vmem:[#allocation8 + $0x78] sm:$0xff] %v246
    // Predicated region
    $region26: #{tpu_custom_call.1} parent=1 // pred_check
      _
    $region27: #{tpu_custom_call.1} parent=1 // pred_check_branch
      %266 = sbr.rel (0) target = $region29
    $region28: #{tpu_custom_call.1} parent=1 // pred_region
      %s268 = ssub.s32 2048, 2048
      %269 = vsyncadd [#allocation4], %s268
      %s270 = sshll.u32 [#allocation8], 4
      %s271 = int_to_ptr.vmem [resolvable:$true] %s270
      %276 = dma.vmem_to_hbm [thread:$0]  %s271, 2048, %s3, [#allocation4], 128, 128, 8
    $region29: #{tpu_custom_call.1} parent=1 // pred_fallthru
      _
    // Predicated region
    $region30: #{tpu_custom_call.1} parent=1 // pred_check
      _
    $region31: #{tpu_custom_call.1} parent=1 // pred_check_branch
      %278 = sbr.rel (0) target = $region33
    $region32: #{tpu_custom_call.1} parent=1 // pred_region
      %279 = dma.done [#allocation4], 2048
    $region33: #{tpu_custom_call.1} parent=1 // pred_fallthru
      _
    %280 = vsyncpa [#allocation3], 1
    %281 = vsyncpa [#allocation6], 1
    %282 = vsyncpa [#allocation4], 1

</llo_original>
